<compile_context>
chip_gen: v5e
topology: v5e:2x2
jax: 0.10.0
libtpu: 0.0.40
codegen_flags: <defaults>
</compile_context>

<pallas_src>
import functools

import jax
import jax.numpy as jnp
from jax import lax
from jax.experimental import pallas as pl
from jax.experimental.pallas import tpu as pltpu


# ---------------------------------------------------------------------------
# Fused Pallas kernel: conv-as-matmul + bias + capsule squash (one lane tile)
# ---------------------------------------------------------------------------
def _primary_caps_kernel(patch_ref, w_ref, b_ref, g_ref, out_ref):
    # patch_ref: (CKK, tn)    im2col patch columns for this lane tile
    # w_ref:     (C_out, CKK) flattened conv weight (resident across grid steps)
    # b_ref:     (C_out, 1)   bias (resident)
    # g_ref:     (tn, tn)     0/1 selector: g[i,j]=1 iff lanes i,j share a capsule
    # out_ref:   (C_out, tn)  squashed output tile (f32)
    conv = jnp.dot(w_ref[...], patch_ref[...],
                   preferred_element_type=jnp.float32) + b_ref[...]   # (C_out, tn)
    # Per-capsule ||s||^2 via a tiny selector matmul (stays on the MXU, avoids
    # an 8-lane cross-lane XLU reduce), broadcast back to every lane of a group.
    sq = jnp.dot(conv * conv, g_ref[...],
                 preferred_element_type=jnp.float32)                  # (C_out, tn)
    # squash: ||s||^2/(1+||s||^2) * s / (||s|| + 1e-8)  -- two divides fused.
    scale = sq / ((1.0 + sq) * (jnp.sqrt(sq) + 1e-8))
    out_ref[...] = (conv * scale).astype(out_ref.dtype)


# ---------------------------------------------------------------------------
# Wrapper
# ---------------------------------------------------------------------------
@functools.partial(
    jax.jit,
    static_argnames=("dim_caps", "kernel_size", "stride", "lane_tile", "use_bf16"))
def primary_capsules_forward(x, weight, bias, *, dim_caps, kernel_size=9, stride=2,
                             lane_tile=128, use_bf16=False):
    """x: (B, C_in, H, W) NCHW; weight: (C_out, C_in, K, K); bias: (C_out,)."""
    B, C_in, H, W = x.shape
    C_out = weight.shape[0]
    assert C_out % dim_caps == 0

    # im2col in a single XLA op. Feature order is channel-major (ci, kh, kw),
    # matching weight.reshape(C_out, -1); HIGHEST keeps the 0/1-identity-kernel
    # extraction exact in f32.
    # TODO(synk): for production CapsNet shapes (C_in=256 -> CKK=20736, C_out=256)
    # pull the patch extraction into the kernel (K-loop of strided DMAs over the
    # raw NCHW input) instead of materializing the im2col tensor in HBM.
    patches = lax.conv_general_dilated_patches(
        x, (kernel_size, kernel_size), (stride, stride), "VALID",
        dimension_numbers=("NCHW", "OIHW", "NCHW"),
        precision=lax.Precision.HIGHEST)          # (B, CKK, H_out, W_out)
    _, CKK, H_out, W_out = patches.shape
    P = H_out * W_out
    N = B * P

    # Capsules are consecutive dim_caps chunks of the per-batch NCHW-flat order;
    # with P % dim_caps == 0 they are lane-contiguous chunks of the merged
    # (C_out, B*P) layout and never cross a batch or tile boundary.
    # TODO(synk): a P % dim_caps != 0 config would need a relayout path.
    assert P % dim_caps == 0

    # (B, CKK, P) -> (CKK, B*P): single wrapper transpose so the kernel's lane
    # (last) axis is the wide merged batch*spatial axis.
    patches = patches.reshape(B, CKK, P).transpose(1, 0, 2).reshape(CKK, N)

    tn = lane_tile
    assert tn % 128 == 0 and tn % dim_caps == 0
    n_pad = ((N + tn - 1) // tn) * tn
    if n_pad != N:
        patches = jnp.pad(patches, ((0, 0), (0, n_pad - N)))  # zero cols -> discarded

    in_dtype = jnp.bfloat16 if use_bf16 else jnp.float32
    patches = patches.astype(in_dtype)
    w_flat = weight.reshape(C_out, CKK).astype(in_dtype)       # MXU layout, no transpose
    b_col = bias.reshape(C_out, 1).astype(jnp.float32)

    # Tile-local capsule-group selector, built once (compile-time constant).
    lane_grp = jnp.arange(tn, dtype=jnp.int32) // dim_caps
    gmat = (lane_grp[:, None] == lane_grp[None, :]).astype(jnp.float32)

    grid = (n_pad // tn,)
    itemsize = jnp.dtype(in_dtype).itemsize
    cost = pl.CostEstimate(
        flops=2 * C_out * CKK * n_pad + 2 * C_out * tn * n_pad + 6 * C_out * n_pad,
        transcendentals=C_out * n_pad,
        bytes_accessed=(CKK * n_pad + C_out * CKK) * itemsize
                       + (tn * tn + C_out + C_out * n_pad) * 4)

    out = pl.pallas_call(
        _primary_caps_kernel,
        out_shape=jax.ShapeDtypeStruct((C_out, n_pad), jnp.float32),
        grid=grid,
        in_specs=[
            pl.BlockSpec((CKK, tn), lambda j: (0, j)),      # patches: walk lane tiles
            pl.BlockSpec((C_out, CKK), lambda j: (0, 0)),   # weight: resident
            pl.BlockSpec((C_out, 1), lambda j: (0, 0)),     # bias: resident
            pl.BlockSpec((tn, tn), lambda j: (0, 0)),       # selector: resident
        ],
        out_specs=pl.BlockSpec((C_out, tn), lambda j: (0, j)),
        compiler_params=pltpu.CompilerParams(
            dimension_semantics=("parallel",),               # 2 TCs on v7x
            vmem_limit_bytes=32 * 1024 * 1024),
        cost_estimate=cost,
    )(patches, w_flat, b_col, gmat)

    # (C_out, B*P) -> (B, C_out, P) NCHW-flat per batch; PyTorch's double .view()
    # is then exactly the contiguous reshape to (B, -1, dim_caps).
    out = out[:, :N].reshape(C_out, B, P).transpose(1, 0, 2)
    return out.reshape(B, -1, dim_caps)


# ---------------------------------------------------------------------------
# Reference (pure JAX) for sanity checking
# ---------------------------------------------------------------------------
def _reference_forward(x, weight, bias, dim_caps, kernel_size=9, stride=2):
    conv = lax.conv_general_dilated(
        x, weight, window_strides=(stride, stride), padding="VALID",
        dimension_numbers=("NCHW", "OIHW", "NCHW"),
        precision=lax.Precision.HIGHEST) + bias[None, :, None, None]
    B, C_out, H_out, W_out = conv.shape
    out = conv.reshape(B, C_out // dim_caps, H_out, W_out, dim_caps)
    out = out.reshape(B, -1, dim_caps)
    sq = jnp.sum(out ** 2, axis=-1, keepdims=True)
    return sq / (1 + sq) * out / (jnp.sqrt(sq) + 1e-8)


# ---------------------------------------------------------------------------
if __name__ == "__main__":
    # Small shapes consistent with the module:
    # in_channels=4, out_channels=32, dim_caps=8, kernel=9, stride=2
    C_in, C_out, dim_caps, K, stride = 4, 32, 8, 9, 2
    H = W = 16

    key = jax.random.PRNGKey(0)
    kx, kw, kb = jax.random.split(key, 3)

    fan_in = C_in * K * K
    bound = 1.0 / jnp.sqrt(jnp.float32(fan_in))
    weight = jax.random.uniform(kw, (C_out, C_in, K, K), jnp.float32,
                                minval=-bound, maxval=bound)
    bias = jax.random.uniform(kb, (C_out,), jnp.float32,
                              minval=-bound, maxval=bound)

    # --- f32 parity check at B=2 (single lane tile) ---
    B = 2
    x = jax.random.normal(kx, (B, C_in, H, W), dtype=jnp.float32)
    out = primary_capsules_forward(x, weight, bias, dim_caps=dim_caps,
                                   kernel_size=K, stride=stride)
    out = jax.block_until_ready(out)
    ref = _reference_forward(x, weight, bias, dim_caps, kernel_size=K, stride=stride)
    assert out.shape == ref.shape == (B, (C_out // dim_caps) * 4 * 4, dim_caps)
    assert jnp.allclose(out, ref, atol=1e-4, rtol=1e-4), (
        float(jnp.max(jnp.abs(out - ref))))

    # --- f32 parity check at B=16 (exercises grid > 1 over the lane axis) ---
    B2 = 16
    x2 = jax.random.normal(jax.random.PRNGKey(1), (B2, C_in, H, W), jnp.float32)
    out2 = jax.block_until_ready(
        primary_capsules_forward(x2, weight, bias, dim_caps=dim_caps,
                                 kernel_size=K, stride=stride))
    ref2 = _reference_forward(x2, weight, bias, dim_caps, kernel_size=K, stride=stride)
    assert jnp.allclose(out2, ref2, atol=1e-4, rtol=1e-4), (
        float(jnp.max(jnp.abs(out2 - ref2))))

    # --- bf16 matmul-input path (v6e/v7x MXU peak), looser parity ---
    out_bf16 = jax.block_until_ready(
        primary_capsules_forward(x, weight, bias, dim_caps=dim_caps,
                                 kernel_size=K, stride=stride, use_bf16=True))
    assert out_bf16.shape == ref.shape
    assert jnp.allclose(out_bf16, ref, atol=5e-2, rtol=5e-2), (
        float(jnp.max(jnp.abs(out_bf16 - ref))))

    print("KERNEL_OK")
</pallas_src>

<mosaic_0001>
module attributes {stable_mosaic.version = 11 : i64} {
  func.func @_primary_caps_kernel(%arg0: i32, %arg1: memref<324x128xf32, #tpu.memory_space<vmem>>, %arg2: memref<32x324xf32, #tpu.memory_space<vmem>>, %arg3: memref<32x1xf32, #tpu.memory_space<vmem>>, %arg4: memref<128x128xf32, #tpu.memory_space<vmem>>, %arg5: memref<32x128xf32, #tpu.memory_space<vmem>>) attributes {dimension_semantics = [#tpu.dimension_semantics<parallel>], iteration_bounds = array<i64: 1>, scalar_prefetch = 0 : i64, scratch_operands = 0 : i64, tpu.core_type = #tpu.core_type<tc>, window_params = [{transform_indices = @transform_0, window_bounds = array<i64: 324, 128>}, {pipeline_mode = #tpu.pipeline_mode<synchronous>, transform_indices = @transform_1, window_bounds = array<i64: 32, 324>}, {pipeline_mode = #tpu.pipeline_mode<synchronous>, transform_indices = @transform_2, window_bounds = array<i64: 32, 1>}, {pipeline_mode = #tpu.pipeline_mode<synchronous>, transform_indices = @transform_3, window_bounds = array<i64: 128, 128>}, {transform_indices = @transform_4, window_bounds = array<i64: 32, 128>}]} {
    %c0 = arith.constant 0 : index
    %c0_0 = arith.constant 0 : index
    %0 = vector.load %arg2[%c0, %c0_0] : memref<32x324xf32, #tpu.memory_space<vmem>>, vector<32x324xf32>
    %c0_1 = arith.constant 0 : index
    %c0_2 = arith.constant 0 : index
    %1 = vector.load %arg1[%c0_1, %c0_2] : memref<324x128xf32, #tpu.memory_space<vmem>>, vector<324x128xf32>
    %cst = arith.constant dense<0.000000e+00> : vector<32x128xf32>
    %2 = tpu.matmul %0, %1, %cst {dimension_numbers = #tpu.dot_dimension_numbers<[1], [0], [0], [1], [0, 0, 1, 1], [], []>} : vector<32x324xf32>, vector<324x128xf32>, vector<32x128xf32> -> vector<32x128xf32>
    %c0_3 = arith.constant 0 : index
    %c0_4 = arith.constant 0 : index
    %3 = vector.load %arg3[%c0_3, %c0_4] : memref<32x1xf32, #tpu.memory_space<vmem>>, vector<32x1xf32>
    %4 = vector.broadcast %3 : vector<32x1xf32> to vector<32x128xf32>
    %5 = arith.addf %2, %4 : vector<32x128xf32>
    %6 = arith.mulf %5, %5 : vector<32x128xf32>
    %c0_5 = arith.constant 0 : index
    %c0_6 = arith.constant 0 : index
    %7 = vector.load %arg4[%c0_5, %c0_6] : memref<128x128xf32, #tpu.memory_space<vmem>>, vector<128x128xf32>
    %cst_7 = arith.constant dense<0.000000e+00> : vector<32x128xf32>
    %8 = tpu.matmul %6, %7, %cst_7 {dimension_numbers = #tpu.dot_dimension_numbers<[1], [0], [0], [1], [0, 0, 1, 1], [], []>} : vector<32x128xf32>, vector<128x128xf32>, vector<32x128xf32> -> vector<32x128xf32>
    %cst_8 = arith.constant 1.000000e+00 : f32
    %9 = vector.broadcast %cst_8 : f32 to vector<32x128xf32>
    %10 = arith.addf %9, %8 : vector<32x128xf32>
    %11 = math.sqrt %8 : vector<32x128xf32>
    %cst_9 = arith.constant 9.99999993E-9 : f32
    %12 = vector.broadcast %cst_9 : f32 to vector<32x128xf32>
    %13 = arith.addf %11, %12 : vector<32x128xf32>
    %14 = arith.mulf %10, %13 : vector<32x128xf32>
    %15 = arith.divf %8, %14 : vector<32x128xf32>
    %16 = arith.mulf %5, %15 : vector<32x128xf32>
    %c0_10 = arith.constant 0 : index
    %c0_11 = arith.constant 0 : index
    %17 = vector.load %arg5[%c0_10, %c0_11] : memref<32x128xf32, #tpu.memory_space<vmem>>, vector<32x128xf32>
    tpu.vector_store %arg5[%c0_10, %c0_11], %16 {strides = array<i32>} : memref<32x128xf32, #tpu.memory_space<vmem>>, vector<32x128xf32>,
    return
  }
  func.func @transform_0(%arg0: i32) -> (i32, i32) {
    %c0_i32 = arith.constant 0 : i32
    %c0_i32_0 = arith.constant 0 : i32
    return %c0_i32, %arg0 : i32, i32
  }
  func.func @transform_1(%arg0: i32) -> (i32, i32) {
    %c0_i32 = arith.constant 0 : i32
    %c0_i32_0 = arith.constant 0 : i32
    %c0_i32_1 = arith.constant 0 : i32
    return %c0_i32, %c0_i32_0 : i32, i32
  }
  func.func @transform_2(%arg0: i32) -> (i32, i32) {
    %c0_i32 = arith.constant 0 : i32
    %c0_i32_0 = arith.constant 0 : i32
    %c0_i32_1 = arith.constant 0 : i32
    return %c0_i32, %c0_i32_0 : i32, i32
  }
  func.func @transform_3(%arg0: i32) -> (i32, i32) {
    %c0_i32 = arith.constant 0 : i32
    %c0_i32_0 = arith.constant 0 : i32
    %c0_i32_1 = arith.constant 0 : i32
    return %c0_i32, %c0_i32_0 : i32, i32
  }
  func.func @transform_4(%arg0: i32) -> (i32, i32) {
    %c0_i32 = arith.constant 0 : i32
    %c0_i32_0 = arith.constant 0 : i32
    return %c0_i32, %arg0 : i32, i32
  }
}

</mosaic_0001>

<llo_original>
// kernel: primary_capsules_forward.1
$region0: #{primary_capsules_forward.1}
  #allocation0 [shape = 'u32[]', space=smem, size = 0x4, offset = 0x4, fixed_abs, tag = 'smem constant byte address 0x4 - core index']
  #allocation1 [shape = 'u32[72,128]{1,0:T(1,128)}', space=vmem, size = 0x9000, scoped, tag = 'internal scratch']
  %s0 = inlined_call_operand.vmem [shape: f32[324,128], index: 0, kind: input, shape index: {}]
  %s1 = inlined_call_operand.vmem [shape: f32[32,324], index: 1, kind: input, shape index: {}]
  %s2 = inlined_call_operand.vmem [shape: f32[32,1], index: 2, kind: input, shape index: {}]
  %s3 = inlined_call_operand.vmem [shape: f32[128,128], index: 3, kind: input, shape index: {}]
  %s4 = inlined_call_operand.vmem [shape: f32[32,128], index: 4, kind: output, shape index: {}]
  %s5 = sld [smem:[#allocation0]]
  $region26: #{primary_capsules_forward.1} parent=0
    _
  %s7 = ssub.s32 1, %s5
  %s8 = scalar_select 0, %s7, %s5
  // Predicated region
  $region2: #{primary_capsules_forward.1} parent=0 // pred_check
    _
  $region3: #{primary_capsules_forward.1} parent=0 // pred_check_branch
    %10 = sbr.rel (0) target = $region5
  $region4: #{primary_capsules_forward.1} parent=0 // pred_region
    _
  $region5: #{primary_capsules_forward.1} parent=0 // pred_fallthru
    _
  // Predicated region
  $region6: #{primary_capsules_forward.1} parent=0 // pred_check
    _
  $region7: #{primary_capsules_forward.1} parent=0 // pred_check_branch
    %12 = sbr.rel (0) target = $region9
  $region8: #{primary_capsules_forward.1} parent=0 // pred_region
    _
  $region9: #{primary_capsules_forward.1} parent=0 // pred_fallthru
    _
  // Predicated region
  $region10: #{primary_capsules_forward.1} parent=0 // pred_check
    _
  $region11: #{primary_capsules_forward.1} parent=0 // pred_check_branch
    %14 = sbr.rel (0) target = $region13
  $region12: #{primary_capsules_forward.1} parent=0 // pred_region
    _
  $region13: #{primary_capsules_forward.1} parent=0 // pred_fallthru
    _
  // Predicated region
  $region14: #{primary_capsules_forward.1} parent=0 // pred_check
    _
  $region15: #{primary_capsules_forward.1} parent=0 // pred_check_branch
    %16 = sbr.rel (0) target = $region17
  $region16: #{primary_capsules_forward.1} parent=0 // pred_region
    _
  $region17: #{primary_capsules_forward.1} parent=0 // pred_fallthru
    _
  %v17 = vld [vmem:[%s1] sm:$0xff]
  %v18 = vld [vmem:[%s1 + $0x8] sm:$0xff]
  %v19 = vld [vmem:[%s1 + $0x10] sm:$0xff]
  %v20 = vld [vmem:[%s1 + $0x18] sm:$0xff]
  %v21 = vld [vmem:[%s1 + $0x20] sm:$0xff]
  %v22 = vld [vmem:[%s1 + $0x28] sm:$0xff]
  %v23 = vld [vmem:[%s1 + $0x30] sm:$0xff]
  %v24 = vld [vmem:[%s1 + $0x38] sm:$0xff]
  %v25 = vld [vmem:[%s1 + $0x40] sm:$0xff]
  %v26 = vld [vmem:[%s1 + $0x48] sm:$0xff]
  %v27 = vld [vmem:[%s1 + $0x50] sm:$0xff]
  %v28 = vld [vmem:[%s1 + $0x58] sm:$0xff]
  %v29 = vld [vmem:[%s0] sm:$0xff]
  %v30 = vld [vmem:[%s0 + $0x8] sm:$0xff]
  %v31 = vld [vmem:[%s0 + $0x10] sm:$0xff]
  %v32 = vld [vmem:[%s0 + $0x18] sm:$0xff]
  %v33 = vld [vmem:[%s0 + $0x20] sm:$0xff]
  %v34 = vld [vmem:[%s0 + $0x28] sm:$0xff]
  %v35 = vld [vmem:[%s0 + $0x30] sm:$0xff]
  %v36 = vld [vmem:[%s0 + $0x38] sm:$0xff]
  %v37 = vld [vmem:[%s0 + $0x40] sm:$0xff]
  %v38 = vld [vmem:[%s0 + $0x48] sm:$0xff]
  %v39 = vld [vmem:[%s0 + $0x50] sm:$0xff]
  %v40 = vld [vmem:[%s0 + $0x58] sm:$0xff]
  %v41 = vld [vmem:[%s0 + $0x60] sm:$0xff]
  %v42 = vld [vmem:[%s0 + $0x68] sm:$0xff]
  %v43 = vld [vmem:[%s0 + $0x70] sm:$0xff]
  %v44 = vld [vmem:[%s0 + $0x78] sm:$0xff]
  %v45 = vld [vmem:[%s0 + $0x80] sm:$0xff]
  %v46 = vld [vmem:[%s0 + $0x88] sm:$0xff]
  %v47 = vld [vmem:[%s0 + $0x90] sm:$0xff]
  %v48 = vld [vmem:[%s0 + $0x98] sm:$0xff]
  %v49 = vld [vmem:[%s0 + $0xa0] sm:$0xff]
  %v50 = vld [vmem:[%s0 + $0xa8] sm:$0xff]
  %v51 = vld [vmem:[%s0 + $0xb0] sm:$0xff]
  %v52 = vld [vmem:[%s0 + $0xb8] sm:$0xff]
  %v53 = vld [vmem:[%s0 + $0xc0] sm:$0xff]
  %v54 = vld [vmem:[%s0 + $0xc8] sm:$0xff]
  %v55 = vld [vmem:[%s0 + $0xd0] sm:$0xff]
  %v56 = vld [vmem:[%s0 + $0xd8] sm:$0xff]
  %v57 = vld [vmem:[%s0 + $0xe0] sm:$0xff]
  %v58 = vld [vmem:[%s0 + $0xe8] sm:$0xff]
  %v59 = vld [vmem:[%s0 + $0xf0] sm:$0xff]
  %v60 = vld [vmem:[%s0 + $0xf8] sm:$0xff]
  %v61 = vld [vmem:[%s0 + $0x100] sm:$0xff]
  %v62 = vld [vmem:[%s0 + $0x108] sm:$0xff]
  %v63 = vld [vmem:[%s0 + $0x110] sm:$0xff]
  %v64 = vld [vmem:[%s0 + $0x118] sm:$0xff]
  %v65 = vld [vmem:[%s0 + $0x120] sm:$0xff]
  %v66 = vld [vmem:[%s0 + $0x128] sm:$0xff]
  %v67 = vld [vmem:[%s0 + $0x130] sm:$0xff]
  %v68 = vld [vmem:[%s0 + $0x138] sm:$0xff]
  %v69 = vld [vmem:[%s0 + $0x140] sm:$0xf]
  %v70 = vld [vmem:[%s2] sm:$0xff]
  %v71 = vld [vmem:[%s2 + $0x8] sm:$0xff]
  %v72 = vld [vmem:[%s2 + $0x10] sm:$0xff]
  %v73 = vld [vmem:[%s2 + $0x18] sm:$0xff]
  %75 = vset.pattern.permute.xlu0 0
  %76 = vperm.xlu0 %75, %v70
  %v77 = vpop.permute.xlu0 %76
  %80 = vset.pattern.permute.xlu0 0
  %81 = vperm.xlu0 %80, %v71
  %v82 = vpop.permute.xlu0 %81
  %85 = vset.pattern.permute.xlu0 0
  %86 = vperm.xlu0 %85, %v72
  %v87 = vpop.permute.xlu0 %86
  %90 = vset.pattern.permute.xlu0 0
  %91 = vperm.xlu0 %90, %v73
  %v92 = vpop.permute.xlu0 %91
  %vm94 = vcmask 556032
  %v96 = vsel %vm94, %v19, 0
  %v99 = vsel %vm94, %v22, 0
  %v102 = vsel %vm94, %v25, 0
  %v105 = vsel %vm94, %v28, 0
  %vm107 = vcmask 1043456
  %v109 = vsel %vm107, %v69, 0
  %111 = vmatpush.msra.mxu0 %v44
  %112 = vmatpush.msra.mxu0 %v43
  %113 = vmatpush.msra.mxu0 %v42
  %114 = vmatpush.msra.mxu0 %v41
  %115 = vmatpush.msra.mxu0 %v40
  %116 = vmatpush.msra.mxu0 %v39
  %117 = vmatpush.msra.mxu0 %v38
  %118 = vmatpush.msra.mxu0 %v37
  %119 = vmatpush.msra.mxu0 %v36
  %120 = vmatpush.msra.mxu0 %v35
  %121 = vmatpush.msra.mxu0 %v34
  %122 = vmatpush.msra.mxu0 %v33
  %123 = vmatpush.msra.mxu0 %v32
  %124 = vmatpush.msra.mxu0 %v31
  %125 = vmatpush.msra.mxu0 %v30
  %126 = vmatpush.msra.mxu0 %v29
  %127 = vmatmul.f32.gmra.mxu0 %v17
  %v128 = vpop.f32.mrf.mxu0
  %v129 = vadd.f32 %v77, %v128
  %130 = vmatmul.f32.gmra.mxu0 %v20
  %v131 = vpop.f32.mrf.mxu0
  %v132 = vadd.f32 %v82, %v131
  %133 = vmatmul.f32.gmra.mxu0 %v23
  %v134 = vpop.f32.mrf.mxu0
  %v135 = vadd.f32 %v87, %v134
  %136 = vmatmul.f32.gmra.mxu0 %v26
  %v137 = vpop.f32.mrf.mxu0
  %v138 = vadd.f32 %v92, %v137
  %139 = vdwg.mxu0
  %140 = vmatpush.msra.mxu0 %v60
  %141 = vmatpush.msra.mxu0 %v59
  %142 = vmatpush.msra.mxu0 %v58
  %143 = vmatpush.msra.mxu0 %v57
  %144 = vmatpush.msra.mxu0 %v56
  %145 = vmatpush.msra.mxu0 %v55
  %146 = vmatpush.msra.mxu0 %v54
  %147 = vmatpush.msra.mxu0 %v53
  %148 = vmatpush.msra.mxu0 %v52
  %149 = vmatpush.msra.mxu0 %v51
  %150 = vmatpush.msra.mxu0 %v50
  %151 = vmatpush.msra.mxu0 %v49
  %152 = vmatpush.msra.mxu0 %v48
  %153 = vmatpush.msra.mxu0 %v47
  %154 = vmatpush.msra.mxu0 %v46
  %155 = vmatpush.msra.mxu0 %v45
  %156 = vmatmul.f32.gmra.mxu0 %v18
  %v157 = vpop.f32.mrf.mxu0
  %v158 = vadd.f32 %v129, %v157
  %159 = vmatmul.f32.gmra.mxu0 %v21
  %v160 = vpop.f32.mrf.mxu0
  %v161 = vadd.f32 %v132, %v160
  %162 = vmatmul.f32.gmra.mxu0 %v24
  %v163 = vpop.f32.mrf.mxu0
  %v164 = vadd.f32 %v135, %v163
  %165 = vmatmul.f32.gmra.mxu0 %v27
  %v166 = vpop.f32.mrf.mxu0
  %v167 = vadd.f32 %v138, %v166
  %168 = vdwg.mxu0
  %169 = vmatpush.msra.mxu0 0.0
  %170 = vmatpush.msra.mxu0 0.0
  %171 = vmatpush.msra.mxu0 0.0
  %172 = vmatpush.msra.mxu0 0.0
  %173 = vmatpush.msra.mxu0 0.0
  %174 = vmatpush.msra.mxu0 0.0
  %175 = vmatpush.msra.mxu0 0.0
  %176 = vmatpush.msra.mxu0 %v109
  %177 = vmatpush.msra.mxu0 %v68
  %178 = vmatpush.msra.mxu0 %v67
  %179 = vmatpush.msra.mxu0 %v66
  %180 = vmatpush.msra.mxu0 %v65
  %181 = vmatpush.msra.mxu0 %v64
  %182 = vmatpush.msra.mxu0 %v63
  %183 = vmatpush.msra.mxu0 %v62
  %184 = vmatpush.msra.mxu0 %v61
  %185 = vmatmul.f32.gmra.mxu0 %v96
  %v186 = vpop.f32.mrf.mxu0
  %v187 = vadd.f32 %v158, %v186
  %188 = vmatmul.f32.gmra.mxu0 %v99
  %v189 = vpop.f32.mrf.mxu0
  %v190 = vadd.f32 %v161, %v189
  %191 = vmatmul.f32.gmra.mxu0 %v102
  %v192 = vpop.f32.mrf.mxu0
  %v193 = vadd.f32 %v164, %v192
  %194 = vmatmul.f32.gmra.mxu0 %v105
  %v195 = vpop.f32.mrf.mxu0
  %v196 = vadd.f32 %v167, %v195
  %197 = vdwg.mxu0
  %v198 = vmul.f32 %v187, %v187
  %v199 = vmul.f32 %v190, %v190
  %v200 = vmul.f32 %v193, %v193
  %v201 = vmul.f32 %v196, %v196
  %v202 = vld [vmem:[%s3] sm:$0xff]
  %v203 = vld [vmem:[%s3 + $0x8] sm:$0xff]
  %v204 = vld [vmem:[%s3 + $0x10] sm:$0xff]
  %v205 = vld [vmem:[%s3 + $0x18] sm:$0xff]
  %v206 = vld [vmem:[%s3 + $0x20] sm:$0xff]
  %v207 = vld [vmem:[%s3 + $0x28] sm:$0xff]
  %v208 = vld [vmem:[%s3 + $0x30] sm:$0xff]
  %v209 = vld [vmem:[%s3 + $0x38] sm:$0xff]
  %v210 = vld [vmem:[%s3 + $0x40] sm:$0xff]
  %v211 = vld [vmem:[%s3 + $0x48] sm:$0xff]
  %v212 = vld [vmem:[%s3 + $0x50] sm:$0xff]
  %v213 = vld [vmem:[%s3 + $0x58] sm:$0xff]
  %v214 = vld [vmem:[%s3 + $0x60] sm:$0xff]
  %v215 = vld [vmem:[%s3 + $0x68] sm:$0xff]
  %v216 = vld [vmem:[%s3 + $0x70] sm:$0xff]
  %v217 = vld [vmem:[%s3 + $0x78] sm:$0xff]
  %218 = vmatpush.msra.mxu0 %v217
  %219 = vmatpush.msra.mxu0 %v216
  %220 = vmatpush.msra.mxu0 %v215
  %221 = vmatpush.msra.mxu0 %v214
  %222 = vmatpush.msra.mxu0 %v213
  %223 = vmatpush.msra.mxu0 %v212
  %224 = vmatpush.msra.mxu0 %v211
  %225 = vmatpush.msra.mxu0 %v210
  %226 = vmatpush.msra.mxu0 %v209
  %227 = vmatpush.msra.mxu0 %v208
  %228 = vmatpush.msra.mxu0 %v207
  %229 = vmatpush.msra.mxu0 %v206
  %230 = vmatpush.msra.mxu0 %v205
  %231 = vmatpush.msra.mxu0 %v204
  %232 = vmatpush.msra.mxu0 %v203
  %233 = vmatpush.msra.mxu0 %v202
  %234 = vmatmul.f32.gmra.mxu0 %v198
  %v235 = vpop.f32.mrf.mxu0
  %v236 = vadd.f32 0.0, %v235
  %237 = vmatmul.f32.gmra.mxu0 %v199
  %v238 = vpop.f32.mrf.mxu0
  %v239 = vadd.f32 0.0, %v238
  %240 = vmatmul.f32.gmra.mxu0 %v200
  %v241 = vpop.f32.mrf.mxu0
  %v242 = vadd.f32 0.0, %v241
  %243 = vmatmul.f32.gmra.mxu0 %v201
  %v244 = vpop.f32.mrf.mxu0
  %v245 = vadd.f32 0.0, %v244
  %246 = vdwg.mxu0
  %v247 = vadd.f32 %v236, 1.0
  %v248 = vadd.f32 %v239, 1.0
  %v249 = vadd.f32 %v242, 1.0
  %v250 = vadd.f32 %v245, 1.0
  %v251 = vrsqrt.pop %v236
  %v252 = vmul.f32 %v251, %v236
  %v253 = vmul.f32 %v252, %v251
  %v254 = vmul.f32 0.5, %v253
  %v255 = vsub.f32 1.5, %v254
  %v256 = vmul.f32 %v251, %v255
  %v257 = vmul.f32 %v236, %v256
  %vm258 = vcmp.eq.f32.partialorder %v236, inf
  %v259 = vsel %vm258, %v236, %v257
  %vm260 = vcmp.eq.f32.partialorder %v236, 0.0
  %v261 = vand.u32 %v236, 2147483648
  %v262 = vsel %vm260, %v261, %v259
  %v263 = vrsqrt.pop %v239
  %v264 = vmul.f32 %v263, %v239
  %v265 = vmul.f32 %v264, %v263
  %v266 = vmul.f32 0.5, %v265
  %v267 = vsub.f32 1.5, %v266
  %v268 = vmul.f32 %v263, %v267
  %v269 = vmul.f32 %v239, %v268
  %vm270 = vcmp.eq.f32.partialorder %v239, inf
  %v271 = vsel %vm270, %v239, %v269
  %vm272 = vcmp.eq.f32.partialorder %v239, 0.0
  %v273 = vand.u32 %v239, 2147483648
  %v274 = vsel %vm272, %v273, %v271
  %v275 = vrsqrt.pop %v242
  %v276 = vmul.f32 %v275, %v242
  %v277 = vmul.f32 %v276, %v275
  %v278 = vmul.f32 0.5, %v277
  %v279 = vsub.f32 1.5, %v278
  %v280 = vmul.f32 %v275, %v279
  %v281 = vmul.f32 %v242, %v280
  %vm282 = vcmp.eq.f32.partialorder %v242, inf
  %v283 = vsel %vm282, %v242, %v281
  %vm284 = vcmp.eq.f32.partialorder %v242, 0.0
  %v285 = vand.u32 %v242, 2147483648
  %v286 = vsel %vm284, %v285, %v283
  %v287 = vrsqrt.pop %v245
  %v288 = vmul.f32 %v287, %v245
  %v289 = vmul.f32 %v288, %v287
  %v290 = vmul.f32 0.5, %v289
  %v291 = vsub.f32 1.5, %v290
  %v292 = vmul.f32 %v287, %v291
  %v293 = vmul.f32 %v245, %v292
  %vm294 = vcmp.eq.f32.partialorder %v245, inf
  %v295 = vsel %vm294, %v245, %v293
  %vm296 = vcmp.eq.f32.partialorder %v245, 0.0
  %v297 = vand.u32 %v245, 2147483648
  %v298 = vsel %vm296, %v297, %v295
  %v299 = vadd.f32 %v262, 1e-08
  %v300 = vadd.f32 %v274, 1e-08
  %v301 = vadd.f32 %v286, 1e-08
  %v302 = vadd.f32 %v298, 1e-08
  %v303 = vmul.f32 %v247, %v299
  %v304 = vmul.f32 %v248, %v300
  %v305 = vmul.f32 %v249, %v301
  %v306 = vmul.f32 %v250, %v302
  %v307 = vrcp.pop %v303
  %v308 = vmul.f32 %v303, %v307
  %v309 = vsub.f32 1.0, %v308
  %v310 = vmul.f32 %v307, %v309
  %v311 = vadd.f32 %v307, %v310
  %vm312 = vweird.f32 %v303
  %vm313 = vweird.f32 %v307
  %vm314 = vmor %vm312, %vm313
  %v315 = vsel %vm314, %v307, %v311
  %v316 = vand.u32 2147483647, %v303
  %vm317 = vcmp.eq.f32.partialorder %v316, 8.507059e+37
  %v318 = vand.u32 %v303, 2147483648
  %v319 = vor.u32 1.1754944e-38, %v318
  %v320 = vsel %vm317, %v319, %v315
  %v321 = vmul.f32 %v236, %v320
  %v322 = vrcp.pop %v304
  %v323 = vmul.f32 %v304, %v322
  %v324 = vsub.f32 1.0, %v323
  %v325 = vmul.f32 %v322, %v324
  %v326 = vadd.f32 %v322, %v325
  %vm327 = vweird.f32 %v304
  %vm328 = vweird.f32 %v322
  %vm329 = vmor %vm327, %vm328
  %v330 = vsel %vm329, %v322, %v326
  %v331 = vand.u32 2147483647, %v304
  %vm332 = vcmp.eq.f32.partialorder %v331, 8.507059e+37
  %v333 = vand.u32 %v304, 2147483648
  %v334 = vor.u32 1.1754944e-38, %v333
  %v335 = vsel %vm332, %v334, %v330
  %v336 = vmul.f32 %v239, %v335
  %v337 = vrcp.pop %v305
  %v338 = vmul.f32 %v305, %v337
  %v339 = vsub.f32 1.0, %v338
  %v340 = vmul.f32 %v337, %v339
  %v341 = vadd.f32 %v337, %v340
  %vm342 = vweird.f32 %v305
  %vm343 = vweird.f32 %v337
  %vm344 = vmor %vm342, %vm343
  %v345 = vsel %vm344, %v337, %v341
  %v346 = vand.u32 2147483647, %v305
  %vm347 = vcmp.eq.f32.partialorder %v346, 8.507059e+37
  %v348 = vand.u32 %v305, 2147483648
  %v349 = vor.u32 1.1754944e-38, %v348
  %v350 = vsel %vm347, %v349, %v345
  %v351 = vmul.f32 %v242, %v350
  %v352 = vrcp.pop %v306
  %v353 = vmul.f32 %v306, %v352
  %v354 = vsub.f32 1.0, %v353
  %v355 = vmul.f32 %v352, %v354
  %v356 = vadd.f32 %v352, %v355
  %vm357 = vweird.f32 %v306
  %vm358 = vweird.f32 %v352
  %vm359 = vmor %vm357, %vm358
  %v360 = vsel %vm359, %v352, %v356
  %v361 = vand.u32 2147483647, %v306
  %vm362 = vcmp.eq.f32.partialorder %v361, 8.507059e+37
  %v363 = vand.u32 %v306, 2147483648
  %v364 = vor.u32 1.1754944e-38, %v363
  %v365 = vsel %vm362, %v364, %v360
  %v366 = vmul.f32 %v245, %v365
  %v367 = vmul.f32 %v187, %v321
  %v368 = vmul.f32 %v190, %v336
  %v369 = vmul.f32 %v193, %v351
  %v370 = vmul.f32 %v196, %v366
  %371 = vst [vmem:[%s4] sm:$0xff] %v367
  %372 = vst [vmem:[%s4 + $0x8] sm:$0xff] %v368
  %373 = vst [vmem:[%s4 + $0x10] sm:$0xff] %v369
  %374 = vst [vmem:[%s4 + $0x18] sm:$0xff] %v370
  // Predicated region
  $region18: #{primary_capsules_forward.1} parent=0 // pred_check
    _
  $region19: #{primary_capsules_forward.1} parent=0 // pred_check_branch
    %376 = sbr.rel (0) target = $region21
  $region20: #{primary_capsules_forward.1} parent=0 // pred_region
    _
  $region21: #{primary_capsules_forward.1} parent=0 // pred_fallthru
    _
  // Predicated region
  $region22: #{primary_capsules_forward.1} parent=0 // pred_check
    _
  $region23: #{primary_capsules_forward.1} parent=0 // pred_check_branch
    %378 = sbr.rel (0) target = $region25
  $region24: #{primary_capsules_forward.1} parent=0 // pred_region
    _
  $region25: #{primary_capsules_forward.1} parent=0 // pred_fallthru
    _

</llo_original>
